<compile_context>
chip_gen: v7x
topology: tpu7x:2x2x1
jax: 0.10.0
libtpu: 0.0.40
codegen_flags: <defaults>
</compile_context>

<pallas_src>
import functools

import numpy as np
import jax
import jax.numpy as jnp
from jax.experimental import pallas as pl
from jax.experimental.pallas import tpu as pltpu


def _haar_kernel(x_ref, cm_ref, o_ref, *, W, Wh):
    # x_ref : (1, TC, THh, 2*W)  row-pair-folded input tile
    #         lanes [0, W)   = row 2i,  lanes [W, 2W) = row 2i+1
    # cm_ref: (W, 2*Wh) constant column-combination matrix
    #         cm[2j, j] = cm[2j+1, j] = 1          (column sum)
    #         cm[2j, Wh+j] = 1, cm[2j+1, Wh+j] = -1 (column diff)
    # o_ref : (1, 4, TC, THh, Wh)
    x = x_ref[0].astype(jnp.float32)              # (TC, THh, 2W)
    tc, thh, _ = x.shape

    top = x[:, :, :W]                             # rows 2i
    bot = x[:, :, W:]                             # rows 2i+1
    s = top + bot                                 # vertical sum   (a+c | b+d)
    t = top - bot                                 # vertical diff  (a-c | b-d)

    cm = cm_ref[...].astype(jnp.float32)          # (W, 2*Wh)
    rs = jnp.dot(s.reshape(tc * thh, W), cm,
                 preferred_element_type=jnp.float32).reshape(tc, thh, 2 * Wh)
    rt = jnp.dot(t.reshape(tc * thh, W), cm,
                 preferred_element_type=jnp.float32).reshape(tc, thh, 2 * Wh)

    dt = o_ref.dtype
    o_ref[0, 0] = (rs[:, :, :Wh] * 0.25).astype(dt)   # (a+b+c+d)/4
    o_ref[0, 1] = (rs[:, :, Wh:] * 0.25).astype(dt)   # (a-b+c-d)/4
    o_ref[0, 2] = (rt[:, :, :Wh] * 0.25).astype(dt)   # (a+b-c-d)/4
    o_ref[0, 3] = (rt[:, :, Wh:] * 0.25).astype(dt)   # (a-b-c+d)/4


def haar_downsampling(x, rev=False):
    """Pallas TPU HaarDownsampling.forward (rev=False).

    x: (N, C, H, W), H and W even.  Returns (N, 4*C, H//2, W//2) with channel
    layout [filter, channel] (all LL channels first, etc.), matching PyTorch.
    """
    if rev:
        # TODO(synk): inverse (rev=True) path not implemented.
        raise NotImplementedError("rev=True path not implemented")
    N, C, H, W = x.shape
    assert H % 2 == 0 and W % 2 == 0, "Haar downsampling needs even H, W"
    Hh, Wh = H // 2, W // 2

    # Free view: fold each row pair into the lane dim.
    xr = x.reshape(N, C, Hh, 2 * W)

    # Constant column-combination matrix for the horizontal butterfly.
    cm = np.zeros((W, 2 * Wh), np.float32)
    cols = np.arange(Wh)
    cm[2 * cols, cols] = 1.0
    cm[2 * cols + 1, cols] = 1.0
    cm[2 * cols, Wh + cols] = 1.0
    cm[2 * cols + 1, Wh + cols] = -1.0
    cm = jnp.asarray(cm)

    # Tile selection: keep each input block around ~2 MiB so the auto
    # double-buffered pipeline fits comfortably on v5e/v6e/v7x VMEM.
    itemsize = jnp.dtype(x.dtype).itemsize
    budget = 2 << 20
    tc = 1
    for d in range(C, 0, -1):
        if C % d == 0 and d * Hh * 2 * W * itemsize <= budget:
            tc = d
            break
    thh = Hh
    if tc == 1 and Hh * 2 * W * itemsize > budget:
        for cand in (256, 128, 64, 32, 16, 8):
            if Hh % cand == 0 and cand * 2 * W * itemsize <= budget:
                thh = cand
                break

    grid = (N, C // tc, Hh // thh)
    kernel = functools.partial(_haar_kernel, W=W, Wh=Wh)

    out5 = pl.pallas_call(
        kernel,
        out_shape=jax.ShapeDtypeStruct((N, 4, C, Hh, Wh), x.dtype),
        grid=grid,
        in_specs=[
            pl.BlockSpec((1, tc, thh, 2 * W), lambda n, cb, hb: (n, cb, hb, 0)),
            pl.BlockSpec((W, 2 * Wh), lambda n, cb, hb: (0, 0)),
        ],
        out_specs=pl.BlockSpec((1, 4, tc, thh, Wh),
                               lambda n, cb, hb: (n, 0, cb, hb, 0)),
        compiler_params=pltpu.CompilerParams(
            dimension_semantics=("parallel", "parallel", "parallel")),
    )(xr, cm)

    # Free view: (N, 4, C, Hh, Wh) -> (N, 4*C, Hh, Wh)  (channel = k*C + c).
    return out5.reshape(N, 4 * C, Hh, Wh)


def _reference_haar(x):
    # Pure-JAX reference reproducing the PyTorch module exactly.
    N, C, H, W = x.shape
    w = np.ones((4, 1, 2, 2), np.float32)
    w[1, 0, 0, 1] = -1.0; w[1, 0, 1, 1] = -1.0
    w[2, 0, 1, 0] = -1.0; w[2, 0, 1, 1] = -1.0
    w[3, 0, 1, 0] = -1.0; w[3, 0, 0, 1] = -1.0
    w = np.concatenate([w] * C, axis=0)           # (4C, 1, 2, 2)
    out = jax.lax.conv_general_dilated(
        x.astype(jnp.float32), jnp.asarray(w),
        window_strides=(2, 2), padding="VALID",
        dimension_numbers=("NCHW", "OIHW", "NCHW"),
        feature_group_count=C) / 4.0
    Hh, Wh = H // 2, W // 2
    out = out.reshape(N, C, 4, Hh, Wh)
    out = jnp.transpose(out, (0, 2, 1, 3, 4))
    return out.reshape(N, 4 * C, Hh, Wh).astype(x.dtype)


if __name__ == "__main__":
    key = jax.random.PRNGKey(0)
    # Module with channel_in = 4, small spatial size.
    x = jax.random.normal(key, (2, 4, 16, 16), dtype=jnp.float32)

    out = jax.block_until_ready(haar_downsampling(x))
    ref = jax.block_until_ready(_reference_haar(x))

    assert out.shape == (2, 16, 8, 8), out.shape
    assert jnp.allclose(out, ref, rtol=1e-5, atol=1e-5), float(
        jnp.max(jnp.abs(out - ref)))
    print("KERNEL_OK")
</pallas_src>

<mosaic_0001>
module attributes {stable_mosaic.version = 11 : i64} {
  func.func @_haar_kernel(%arg0: i32, %arg1: i32, %arg2: i32, %arg3: memref<1x4x8x32xf32, #tpu.memory_space<vmem>>, %arg4: memref<16x16xf32, #tpu.memory_space<vmem>>, %arg5: memref<1x4x4x8x8xf32, #tpu.memory_space<vmem>>) attributes {dimension_semantics = [#tpu.dimension_semantics<parallel>, #tpu.dimension_semantics<parallel>, #tpu.dimension_semantics<parallel>], iteration_bounds = array<i64: 2, 1, 1>, scalar_prefetch = 0 : i64, scratch_operands = 0 : i64, tpu.core_type = #tpu.core_type<tc>, window_params = [{transform_indices = @transform_0, window_bounds = array<i64: 1, 4, 8, 32>}, {pipeline_mode = #tpu.pipeline_mode<synchronous>, transform_indices = @transform_1, window_bounds = array<i64: 16, 16>}, {transform_indices = @transform_2, window_bounds = array<i64: 1, 4, 4, 8, 8>}]} {
    %c0 = arith.constant 0 : index
    %c0_0 = arith.constant 0 : index
    %c0_1 = arith.constant 0 : index
    %c0_2 = arith.constant 0 : index
    %0 = vector.load %arg3[%c0, %c0_0, %c0_1, %c0_2] : memref<1x4x8x32xf32, #tpu.memory_space<vmem>>, vector<1x4x8x32xf32>
    %1 = vector.shape_cast %0 : vector<1x4x8x32xf32> to vector<4x8x32xf32>
    %2 = vector.extract_strided_slice %1 {offsets = [0, 0, 0], sizes = [4, 8, 16], strides = [1, 1, 1]} : vector<4x8x32xf32> to vector<4x8x16xf32>
    %3 = vector.extract_strided_slice %1 {offsets = [0, 0, 16], sizes = [4, 8, 16], strides = [1, 1, 1]} : vector<4x8x32xf32> to vector<4x8x16xf32>
    %4 = arith.addf %2, %3 : vector<4x8x16xf32>
    %5 = arith.subf %2, %3 : vector<4x8x16xf32>
    %c0_3 = arith.constant 0 : index
    %c0_4 = arith.constant 0 : index
    %6 = vector.load %arg4[%c0_3, %c0_4] : memref<16x16xf32, #tpu.memory_space<vmem>>, vector<16x16xf32>
    %7 = vector.shape_cast %4 : vector<4x8x16xf32> to vector<32x16xf32>
    %cst = arith.constant dense<0.000000e+00> : vector<32x16xf32>
    %8 = tpu.matmul %7, %6, %cst {dimension_numbers = #tpu.dot_dimension_numbers<[1], [0], [0], [1], [0, 0, 1, 1], [], []>} : vector<32x16xf32>, vector<16x16xf32>, vector<32x16xf32> -> vector<32x16xf32>
    %9 = vector.shape_cast %8 : vector<32x16xf32> to vector<4x8x16xf32>
    %10 = vector.shape_cast %5 : vector<4x8x16xf32> to vector<32x16xf32>
    %cst_5 = arith.constant dense<0.000000e+00> : vector<32x16xf32>
    %11 = tpu.matmul %10, %6, %cst_5 {dimension_numbers = #tpu.dot_dimension_numbers<[1], [0], [0], [1], [0, 0, 1, 1], [], []>} : vector<32x16xf32>, vector<16x16xf32>, vector<32x16xf32> -> vector<32x16xf32>
    %12 = vector.shape_cast %11 : vector<32x16xf32> to vector<4x8x16xf32>
    %13 = vector.extract_strided_slice %9 {offsets = [0, 0, 0], sizes = [4, 8, 8], strides = [1, 1, 1]} : vector<4x8x16xf32> to vector<4x8x8xf32>
    %cst_6 = arith.constant 2.500000e-01 : f32
    %14 = vector.broadcast %cst_6 : f32 to vector<4x8x8xf32>
    %15 = arith.mulf %13, %14 : vector<4x8x8xf32>
    %c0_7 = arith.constant 0 : index
    %c0_8 = arith.constant 0 : index
    %c0_9 = arith.constant 0 : index
    %c0_10 = arith.constant 0 : index
    %c0_11 = arith.constant 0 : index
    %16 = vector.load %arg5[%c0_7, %c0_8, %c0_9, %c0_10, %c0_11] : memref<1x4x4x8x8xf32, #tpu.memory_space<vmem>>, vector<1x1x4x8x8xf32>
    %17 = vector.shape_cast %16 : vector<1x1x4x8x8xf32> to vector<4x8x8xf32>
    %18 = vector.shape_cast %15 : vector<4x8x8xf32> to vector<1x1x4x8x8xf32>
    tpu.vector_store %arg5[%c0_7, %c0_8, %c0_9, %c0_10, %c0_11], %18 {strides = array<i32>} : memref<1x4x4x8x8xf32, #tpu.memory_space<vmem>>, vector<1x1x4x8x8xf32>,
    %19 = vector.extract_strided_slice %9 {offsets = [0, 0, 8], sizes = [4, 8, 8], strides = [1, 1, 1]} : vector<4x8x16xf32> to vector<4x8x8xf32>
    %cst_12 = arith.constant 2.500000e-01 : f32
    %20 = vector.broadcast %cst_12 : f32 to vector<4x8x8xf32>
    %21 = arith.mulf %19, %20 : vector<4x8x8xf32>
    %c0_13 = arith.constant 0 : index
    %c1 = arith.constant 1 : index
    %c0_14 = arith.constant 0 : index
    %c0_15 = arith.constant 0 : index
    %c0_16 = arith.constant 0 : index
    %22 = vector.load %arg5[%c0_13, %c1, %c0_14, %c0_15, %c0_16] : memref<1x4x4x8x8xf32, #tpu.memory_space<vmem>>, vector<1x1x4x8x8xf32>
    %23 = vector.shape_cast %22 : vector<1x1x4x8x8xf32> to vector<4x8x8xf32>
    %24 = vector.shape_cast %21 : vector<4x8x8xf32> to vector<1x1x4x8x8xf32>
    tpu.vector_store %arg5[%c0_13, %c1, %c0_14, %c0_15, %c0_16], %24 {strides = array<i32>} : memref<1x4x4x8x8xf32, #tpu.memory_space<vmem>>, vector<1x1x4x8x8xf32>,
    %25 = vector.extract_strided_slice %12 {offsets = [0, 0, 0], sizes = [4, 8, 8], strides = [1, 1, 1]} : vector<4x8x16xf32> to vector<4x8x8xf32>
    %cst_17 = arith.constant 2.500000e-01 : f32
    %26 = vector.broadcast %cst_17 : f32 to vector<4x8x8xf32>
    %27 = arith.mulf %25, %26 : vector<4x8x8xf32>
    %c0_18 = arith.constant 0 : index
    %c2 = arith.constant 2 : index
    %c0_19 = arith.constant 0 : index
    %c0_20 = arith.constant 0 : index
    %c0_21 = arith.constant 0 : index
    %28 = vector.load %arg5[%c0_18, %c2, %c0_19, %c0_20, %c0_21] : memref<1x4x4x8x8xf32, #tpu.memory_space<vmem>>, vector<1x1x4x8x8xf32>
    %29 = vector.shape_cast %28 : vector<1x1x4x8x8xf32> to vector<4x8x8xf32>
    %30 = vector.shape_cast %27 : vector<4x8x8xf32> to vector<1x1x4x8x8xf32>
    tpu.vector_store %arg5[%c0_18, %c2, %c0_19, %c0_20, %c0_21], %30 {strides = array<i32>} : memref<1x4x4x8x8xf32, #tpu.memory_space<vmem>>, vector<1x1x4x8x8xf32>,
    %31 = vector.extract_strided_slice %12 {offsets = [0, 0, 8], sizes = [4, 8, 8], strides = [1, 1, 1]} : vector<4x8x16xf32> to vector<4x8x8xf32>
    %cst_22 = arith.constant 2.500000e-01 : f32
    %32 = vector.broadcast %cst_22 : f32 to vector<4x8x8xf32>
    %33 = arith.mulf %31, %32 : vector<4x8x8xf32>
    %c0_23 = arith.constant 0 : index
    %c3 = arith.constant 3 : index
    %c0_24 = arith.constant 0 : index
    %c0_25 = arith.constant 0 : index
    %c0_26 = arith.constant 0 : index
    %34 = vector.load %arg5[%c0_23, %c3, %c0_24, %c0_25, %c0_26] : memref<1x4x4x8x8xf32, #tpu.memory_space<vmem>>, vector<1x1x4x8x8xf32>
    %35 = vector.shape_cast %34 : vector<1x1x4x8x8xf32> to vector<4x8x8xf32>
    %36 = vector.shape_cast %33 : vector<4x8x8xf32> to vector<1x1x4x8x8xf32>
    tpu.vector_store %arg5[%c0_23, %c3, %c0_24, %c0_25, %c0_26], %36 {strides = array<i32>} : memref<1x4x4x8x8xf32, #tpu.memory_space<vmem>>, vector<1x1x4x8x8xf32>,
    return
  }
  func.func @transform_0(%arg0: i32, %arg1: i32, %arg2: i32) -> (i32, i32, i32, i32) {
    %c0_i32 = arith.constant 0 : i32
    %c0_i32_0 = arith.constant 0 : i32
    return %arg0, %arg1, %arg2, %c0_i32 : i32, i32, i32, i32
  }
  func.func @transform_1(%arg0: i32, %arg1: i32, %arg2: i32) -> (i32, i32) {
    %c0_i32 = arith.constant 0 : i32
    %c0_i32_0 = arith.constant 0 : i32
    %c0_i32_1 = arith.constant 0 : i32
    return %c0_i32, %c0_i32_0 : i32, i32
  }
  func.func @transform_2(%arg0: i32, %arg1: i32, %arg2: i32) -> (i32, i32, i32, i32, i32) {
    %c0_i32 = arith.constant 0 : i32
    %c0_i32_0 = arith.constant 0 : i32
    %c0_i32_1 = arith.constant 0 : i32
    return %arg0, %c0_i32, %arg1, %arg2, %c0_i32_0 : i32, i32, i32, i32, i32
  }
}

</mosaic_0001>

<llo_original>
// kernel: tpu_custom_call.1
$region0: #{tpu_custom_call.1}
  #allocation0 [shape = 'u32[]', space=smem, size = 0x4, offset = 0x4, fixed_abs, tag = 'smem constant byte address 0x4 - core index']
  #allocation1 [shape = 'u32[144,128]{1,0:T(1,128)}', space=vmem, size = 0x12000, scoped, tag = 'internal scratch']
  %s0 = inlined_call_operand.hbm [shape: f32[2,4,8,32], index: 0, kind: input, shape index: {}]
  %s1 = inlined_call_operand.hbm [shape: f32[16,16], index: 1, kind: input, shape index: {}]
  %s2 = inlined_call_operand.hbm [shape: f32[2,4,4,8,8], index: 2, kind: output, shape index: {}]
  %s3 = sld [smem:[#allocation0]]
  $region49: #{tpu_custom_call.1} parent=0
    _
  %s5 = ssub.s32 1, %s3
  %s6 = scalar_select 0, %s5, %s3
  $region1: #{tpu_custom_call.1} parent=0
    #allocation2 [shape = 'u8[32768]{0}', space=vmem, size = 0x8000, scoped, tag = 'input window, operand 0']
    #allocation3 [shape = 's32[2]{0}', space=sflag, size = 0x8, scoped, tag = 'scoped memory for tpu_custom_call.1']
    #allocation4 [shape = 's32[2]{0}', space=sflag, size = 0x8, scoped, tag = 'scoped memory for tpu_custom_call.1']
    #allocation5 [shape = 'u8[8192]{0}', space=vmem, size = 0x2000, scoped, tag = 'input window, operand 1, single buffered']
    #allocation6 [shape = 's32[1]{0}', space=sflag, size = 0x4, scoped, tag = 'scoped memory for tpu_custom_call.1']
    #allocation7 [shape = 'u8[131072]{0}', space=vmem, size = 0x20000, scoped, tag = 'output window, operand 0']
    %7 = vsyncpa [#allocation3], 0
    %s8 = scalar_lea.sflag [#allocation3], 1
    %9 = vsyncpa %s8, 0
    %10 = vsyncpa [#allocation6], 0
    %11 = vsyncpa [#allocation4], 0
    %s12 = scalar_lea.sflag [#allocation4], 1
    %13 = vsyncpa %s12, 0
    loop: start=0, step=1, limit=4
    $region2: #{tpu_custom_call.1} parent=1 // loop_pre_header
      _
    $region3: #{tpu_custom_call.1} parent=1 // loop_header
      %s15 = sphi 0, %s19
      %p16 = scmp.ge.s32.totalorder %s15, 4
      %s22 = sphi 0, %s41
      %s23 = sphi 0, %s37
      %s24 = sphi 0, %s33
      %s25 = sphi 0, %s22
      %s26 = sphi 0, %s23
      %s27 = sphi 0, %s24
      %s28 = sphi 0, %s25
      %s29 = sphi 0, %s26
      %s30 = sphi 0, %s27
      %s48 = sphi 0, %s50
      %s51 = sphi 0, %s48
      %s52 = sphi 0, %s51
      %s68 = sphi 0, %s52
      %s72 = sphi 0, %s72
      %s74 = sphi 0, %s72
      %s75 = sphi 0, %s74
      %s89 = sphi 0, %s75
      %s99 = sphi 0, %s101
      %s102 = sphi 0, %s99
      %s103 = sphi 0, %s102
      %s119 = sphi 0, %s103
    $region4: #{tpu_custom_call.1} parent=1 // loop_header_branch
      %18 = sbr.rel (%p16) target = $region8
    $region5: #{tpu_custom_call.1} parent=1 // loop_body
      %s20 = ssub.s32 %s15, 1
      %s21 = ssub.s32 %s15, 2
      %s31 = sadd.s32 1, %s24
      %p32 = scmp.ge.s32.totalorder %s31, 1
      %s33 = scalar_select %p32, 0, %s31
      %s34 = sadd.s32 1, %s23
      %s35 = scalar_select %p32, %s34, %s23
      %p36 = scmp.ge.s32.totalorder %s35, 1
      %s37 = scalar_select %p36, 0, %s35
      %s38 = sadd.s32 1, %s22
      %s39 = scalar_select %p36, %s38, %s22
      %p40 = scmp.ge.s32.totalorder %s39, 2
      %s41 = scalar_select %p40, 0, %s39
      %s42 = ssub.s32 %s22, %s41
      %s43 = ssub.s32 %s23, %s37
      %s44 = sor.u32 %s42, %s43
      %s45 = ssub.s32 %s24, %s33
      %s46 = sor.u32 %s44, %s45
      %p47 = scmp.eq.s32.totalorder %s46, 0
      %s49 = sadd.s32 %s48, 1
      %s50 = scalar_select %p47, %s48, %s49
      %p53 = pneg %p47
      %p54 = scmp.eq.s32.totalorder %s15, 1
      %p55 = por %p53, %p54
      %p56 = scmp.ne.s32.totalorder %s48, %s51
      %p57 = scmp.eq.s32.totalorder %s15, 0
      %p58 = por %p56, %p57
      %p59 = scmp.ne.s32.totalorder %s48, %s51
      %p60 = scmp.eq.s32.totalorder %s20, 1
      %p61 = por %p59, %p60
      %p62 = scmp.ne.s32.totalorder %s51, %s52
      %p63 = scmp.eq.s32.totalorder %s20, 0
      %p64 = por %p62, %p63
      %p65 = scmp.ne.s32.totalorder %s51, %s52
      %p66 = scmp.eq.s32.totalorder %s21, 1
      %p67 = por %p65, %p66
      %p69 = scmp.ne.s32.totalorder %s52, %s68
      %p70 = scmp.eq.s32.totalorder %s21, 0
      %p71 = por %p69, %p70
      %s73 = sadd.s32 %s72, 1
      %p76 = scmp.eq.s32.totalorder %s15, 1
      %p77 = scmp.ne.s32.totalorder %s72, %s74
      %p78 = scmp.eq.s32.totalorder %s15, 0
      %p79 = por %p77, %p78
      %p80 = scmp.ne.s32.totalorder %s72, %s74
      %p81 = scmp.eq.s32.totalorder %s20, 1
      %p82 = por %p80, %p81
      %p83 = scmp.ne.s32.totalorder %s74, %s75
      %p84 = scmp.eq.s32.totalorder %s20, 0
      %p85 = por %p83, %p84
      %p86 = scmp.ne.s32.totalorder %s74, %s75
      %p87 = scmp.eq.s32.totalorder %s21, 1
      %p88 = por %p86, %p87
      %p90 = scmp.ne.s32.totalorder %s75, %s89
      %p91 = scmp.eq.s32.totalorder %s21, 0
      %p92 = por %p90, %p91
      %s93 = ssub.s32 %s22, %s41
      %s94 = ssub.s32 %s23, %s37
      %s95 = sor.u32 %s93, %s94
      %s96 = ssub.s32 %s24, %s33
      %s97 = sor.u32 %s95, %s96
      %p98 = scmp.eq.s32.totalorder %s97, 0
      %s100 = sadd.s32 %s99, 1
      %s101 = scalar_select %p98, %s99, %s100
      %p104 = pneg %p98
      %p105 = scmp.eq.s32.totalorder %s15, 1
      %p106 = por %p104, %p105
      %p107 = scmp.ne.s32.totalorder %s99, %s102
      %p108 = scmp.eq.s32.totalorder %s15, 0
      %p109 = por %p107, %p108
      %p110 = scmp.ne.s32.totalorder %s99, %s102
      %p111 = scmp.eq.s32.totalorder %s20, 1
      %p112 = por %p110, %p111
      %p113 = scmp.ne.s32.totalorder %s102, %s103
      %p114 = scmp.eq.s32.totalorder %s20, 0
      %p115 = por %p113, %p114
      %p116 = scmp.ne.s32.totalorder %s102, %s103
      %p117 = scmp.eq.s32.totalorder %s21, 1
      %p118 = por %p116, %p117
      %p120 = scmp.ne.s32.totalorder %s103, %s119
      %p121 = scmp.eq.s32.totalorder %s21, 0
      %p122 = por %p120, %p121
      %p123 = scmp.le.s32.totalorder 1, %s15
      %p124 = scmp.lt.s32.totalorder %s15, 3
      %p125 = pnand %p123, %p124
      %p126 = pneg %p125
      // Predicated region
      $region9: #{tpu_custom_call.1} parent=5 // pred_check
        _
      $region10: #{tpu_custom_call.1} parent=5 // pred_check_branch
        %128 = sbr.rel (%p125) target = $region12
      $region11: #{tpu_custom_call.1} parent=5 // pred_region
        %s129 = ssub.s32 %s15, 1
        // Predicated region
        $region13: #{tpu_custom_call.1} parent=11 // pred_check
          %p130 = pneg %p85
        $region14: #{tpu_custom_call.1} parent=11 // pred_check_branch
          %132 = sbr.rel (%p130) target = $region16
        $region15: #{tpu_custom_call.1} parent=11 // pred_region
          %s134 = ssub.s32 256, 256
          %135 = vsyncadd [#allocation6], %s134
          %s136 = sshll.u32 [#allocation5], 4
          %s137 = int_to_ptr.vmem [resolvable:$true] %s136
          %142 = dma.hbm_to_vmem [thread:$0]  %s1, 256, %s137, [#allocation6], 128, 128, 8
        $region16: #{tpu_custom_call.1} parent=11 // pred_fallthru
          _
      $region12: #{tpu_custom_call.1} parent=5 // pred_fallthru
        _
      %p143 = scmp.lt.s32.totalorder %s15, 2
      // Predicated region
      $region17: #{tpu_custom_call.1} parent=5 // pred_check
        %p144 = pneg %p143
      $region18: #{tpu_custom_call.1} parent=5 // pred_check_branch
        %146 = sbr.rel (%p144) target = $region20
      $region19: #{tpu_custom_call.1} parent=5 // pred_region
        // Predicated region
        $region21: #{tpu_custom_call.1} parent=19 // pred_check
          %p147 = pneg %p58
        $region22: #{tpu_custom_call.1} parent=19 // pred_check_branch
          %149 = sbr.rel (%p147) target = $region24
        $region23: #{tpu_custom_call.1} parent=19 // pred_region
          %s150 = sand.u32 %s48, 1
          %s151 = scalar_lea.sflag [#allocation3], %s150
          %s152 = sand.u32 %s48, 1
          %s153 = smul.addr %s152, 32
          %s154 = scalar_lea.vmem [#allocation2], %s153
          %s155 = smul.u32 4, %s23
          %s157 = ssub.s32 512, 512
          %158 = vsyncadd %s151, %s157
          %s159 = sadd.s32 %s24, %s155
          %s160 = smul.addr %s22, 4
          %s161 = sadd.s32 %s159, %s160
          %s162 = smul.addr %s161, 128
          %s163 = scalar_lea.hbm %s0, %s162
          %s164 = sshll.u32 %s154, 4
          %s165 = int_to_ptr.vmem [resolvable:$true] %s164
          %170 = dma.hbm_to_vmem [thread:$0]  %s163, 512, %s165, %s151, 128, 128, 8
        $region24: #{tpu_custom_call.1} parent=19 // pred_fallthru
          _
      $region20: #{tpu_custom_call.1} parent=5 // pred_fallthru
        _
      %p171 = scmp.le.s32.totalorder 1, %s15
      %p172 = scmp.lt.s32.totalorder %s15, 3
      %p173 = pnand %p171, %p172
      %p174 = pneg %p173
      // Predicated region
      $region25: #{tpu_custom_call.1} parent=5 // pred_check
        _
      $region26: #{tpu_custom_call.1} parent=5 // pred_check_branch
        %176 = sbr.rel (%p173) target = $region28
      $region27: #{tpu_custom_call.1} parent=5 // pred_region
        %s177 = ssub.s32 %s15, 1
        %s178 = sand.u32 %s51, 1
        %s179 = scalar_lea.sflag [#allocation3], %s178
        %s180 = sand.u32 %s51, 1
        %s181 = smul.addr %s180, 32
        %s182 = scalar_lea.vmem [#allocation2], %s181
        // Predicated region
        $region29: #{tpu_custom_call.1} parent=27 // pred_check
          %p183 = pneg %p64
        $region30: #{tpu_custom_call.1} parent=27 // pred_check_branch
          %185 = sbr.rel (%p183) target = $region32
        $region31: #{tpu_custom_call.1} parent=27 // pred_region
          %186 = dma.done %s179, 512
        $region32: #{tpu_custom_call.1} parent=27 // pred_fallthru
          _
        // Predicated region
        $region33: #{tpu_custom_call.1} parent=27 // pred_check
          %p187 = pneg %p85
        $region34: #{tpu_custom_call.1} parent=27 // pred_check_branch
          %189 = sbr.rel (%p187) target = $region36
        $region35: #{tpu_custom_call.1} parent=27 // pred_region
          %190 = dma.done [#allocation6], 256
        $region36: #{tpu_custom_call.1} parent=27 // pred_fallthru
          _
        %s191 = sand.u32 %s51, 1
        %s192 = scalar_lea.sflag [#allocation3], %s191
        %s193 = sand.u32 %s51, 1
        %s194 = smul.addr %s193, 32
        %s195 = scalar_lea.vmem [#allocation2], %s194
        %p196 = pneg %p64
        %p197 = pneg %p61
        %p198 = pneg %p85
        %p199 = pneg %p82
        %p200 = pneg %p115
        %p201 = pneg %p112
        %s202 = sand.u32 %s102, 1
        %s203 = scalar_lea.sflag [#allocation4], %s202
        %s204 = sand.u32 %s102, 1
        %s205 = smul.addr %s204, 128
        %s206 = scalar_lea.vmem [#allocation7], %s205
        %s207 = smul.u32 4, %s26
        %s208 = smul.u32 4, %s26
        %v209 = vld [vmem:[%s182] sm:$0xff]
        %v210 = vld [vmem:[%s182 + $0x8] sm:$0xff]
        %v211 = vld [vmem:[%s182 + $0x10] sm:$0xff]
        %v212 = vld [vmem:[%s182 + $0x18] sm:$0xff]
        %217 = vrot.lane.b32.xlu0 %v209, 112
        %v218 = vpop.permute.xlu0 %217
        %219 = vrot.lane.b32.xlu0 %v210, 112
        %v220 = vpop.permute.xlu0 %219
        %221 = vrot.lane.b32.xlu0 %v211, 112
        %v222 = vpop.permute.xlu0 %221
        %223 = vrot.lane.b32.xlu0 %v212, 112
        %v224 = vpop.permute.xlu0 %223
        %v229 = vadd.f32 %v209, %v218
        %v230 = vadd.f32 %v210, %v220
        %v231 = vadd.f32 %v211, %v222
        %v232 = vadd.f32 %v212, %v224
        %v233 = vsub.f32 %v209, %v218
        %v234 = vsub.f32 %v210, %v220
        %v235 = vsub.f32 %v211, %v222
        %v236 = vsub.f32 %v212, %v224
        %v237 = vld [vmem:[#allocation5] sm:$0xff]
        %v238 = vld [vmem:[#allocation5 + $0x8] sm:$0xff]
        %vm239 = vcmask 130048
        %v241 = vsel %vm239, %v229, 0
        %v244 = vsel %vm239, %v230, 0
        %v247 = vsel %vm239, %v231, 0
        %v250 = vsel %vm239, %v232, 0
        %252 = vmatprep.subr.mxu0 0.0
        %253 = vmatpush1.msra.mxu0 %v237
        %254 = vmatprep.subr.mxu0 0.0
        %255 = vmatpush1.msra.mxu0 %v238
        %256 = vmatprep.subr.mxu0 0.0
        %257 = vmatpush1.msra.mxu0 0.0
        %258 = vmatprep.subr.mxu0 0.0
        %259 = vmatpush1.msra.mxu0 0.0
        %260 = vmatprep.subr.mxu0 0.0
        %261 = vmatpush1.msra.mxu0 0.0
        %262 = vmatprep.subr.mxu0 0.0
        %263 = vmatpush1.msra.mxu0 0.0
        %264 = vmatprep.subr.mxu0 0.0
        %265 = vmatpush1.msra.mxu0 0.0
        %266 = vmatprep.subr.mxu0 0.0
        %267 = vmatpush1.msra.mxu0 0.0
        %268 = vmatprep.subr.mxu0 0.0
        %269 = vmatpush1.msra.mxu0 0.0
        %270 = vmatprep.subr.mxu0 0.0
        %271 = vmatpush1.msra.mxu0 0.0
        %272 = vmatprep.subr.mxu0 0.0
        %273 = vmatpush1.msra.mxu0 0.0
        %274 = vmatprep.subr.mxu0 0.0
        %275 = vmatpush1.msra.mxu0 0.0
        %276 = vmatprep.subr.mxu0 0.0
        %277 = vmatpush1.msra.mxu0 0.0
        %278 = vmatprep.subr.mxu0 0.0
        %279 = vmatpush1.msra.mxu0 0.0
        %280 = vmatprep.subr.mxu0 0.0
        %281 = vmatpush1.msra.mxu0 0.0
        %282 = vmatprep.subr.mxu0 0.0
        %283 = vmatpush1.msra.mxu0 0.0
        %284 = vmatprep.subr.mxu0 0.0
        %285 = vmatpush1.msra.mxu0 0.0
        %286 = vmatprep.subr.mxu0 0.0
        %287 = vmatpush1.msra.mxu0 0.0
        %288 = vmatprep.subr.mxu0 0.0
        %289 = vmatpush1.msra.mxu0 0.0
        %290 = vmatprep.subr.mxu0 0.0
        %291 = vmatpush1.msra.mxu0 0.0
        %292 = vmatprep.subr.mxu0 0.0
        %293 = vmatpush1.msra.mxu0 0.0
        %294 = vmatprep.subr.mxu0 0.0
        %295 = vmatpush1.msra.mxu0 0.0
        %296 = vmatprep.subr.mxu0 0.0
        %297 = vmatpush1.msra.mxu0 0.0
        %298 = vmatprep.subr.mxu0 0.0
        %299 = vmatpush1.msra.mxu0 0.0
        %300 = vmatprep.subr.mxu0 0.0
        %301 = vmatpush1.msra.mxu0 0.0
        %302 = vmatprep.subr.mxu0 0.0
        %303 = vmatpush1.msra.mxu0 0.0
        %304 = vmatprep.subr.mxu0 0.0
        %305 = vmatpush1.msra.mxu0 0.0
        %306 = vmatprep.subr.mxu0 0.0
        %307 = vmatpush1.msra.mxu0 0.0
        %308 = vmatprep.subr.mxu0 0.0
        %309 = vmatpush1.msra.mxu0 0.0
        %310 = vmatprep.subr.mxu0 0.0
        %311 = vmatpush1.msra.mxu0 0.0
        %312 = vmatprep.subr.mxu0 0.0
        %313 = vmatpush1.msra.mxu0 0.0
        %314 = vmatprep.subr.mxu0 0.0
        %315 = vmatpush1.msra.mxu0 0.0
        %316 = vmatprep.mubr.f32.mxu0 0.0
        %317 = vmatmul.mubr.f32.gmra.mrb[0].mxu0 %v241
        %v318 = vpop.f32.mrb[0].mxu0
        %v319 = vadd.f32 0.0, %v318
        %v320 = vpop.f32.mrb[0].mxu0
        %321 = vmatprep.mubr.f32.mxu0 0.0
        %322 = vmatmul.mubr.f32.gmra.mrb[0].mxu0 %v244
        %v323 = vpop.f32.mrb[0].mxu0
        %v324 = vadd.f32 0.0, %v323
        %v325 = vpop.f32.mrb[0].mxu0
        %326 = vmatprep.mubr.f32.mxu0 0.0
        %327 = vmatmul.mubr.f32.gmra.mrb[0].mxu0 %v247
        %v328 = vpop.f32.mrb[0].mxu0
        %v329 = vadd.f32 0.0, %v328
        %v330 = vpop.f32.mrb[0].mxu0
        %331 = vmatprep.mubr.f32.mxu0 0.0
        %332 = vmatmul.mubr.f32.gmra.mrb[0].mxu0 %v250
        %v333 = vpop.f32.mrb[0].mxu0
        %v334 = vadd.f32 0.0, %v333
        %v335 = vpop.f32.mrb[0].mxu0
        %336 = vdwg.mxu0
        %v338 = vsel %vm239, %v233, 0
        %v341 = vsel %vm239, %v234, 0
        %v344 = vsel %vm239, %v235, 0
        %v347 = vsel %vm239, %v236, 0
        %349 = vmatprep.subr.mxu0 0.0
        %350 = vmatpush1.msra.mxu0 %v237
        %351 = vmatprep.subr.mxu0 0.0
        %352 = vmatpush1.msra.mxu0 %v238
        %353 = vmatprep.subr.mxu0 0.0
        %354 = vmatpush1.msra.mxu0 0.0
        %355 = vmatprep.subr.mxu0 0.0
        %356 = vmatpush1.msra.mxu0 0.0
        %357 = vmatprep.subr.mxu0 0.0
        %358 = vmatpush1.msra.mxu0 0.0
        %359 = vmatprep.subr.mxu0 0.0
        %360 = vmatpush1.msra.mxu0 0.0
        %361 = vmatprep.subr.mxu0 0.0
        %362 = vmatpush1.msra.mxu0 0.0
        %363 = vmatprep.subr.mxu0 0.0
        %364 = vmatpush1.msra.mxu0 0.0
        %365 = vmatprep.subr.mxu0 0.0
        %366 = vmatpush1.msra.mxu0 0.0
        %367 = vmatprep.subr.mxu0 0.0
        %368 = vmatpush1.msra.mxu0 0.0
        %369 = vmatprep.subr.mxu0 0.0
        %370 = vmatpush1.msra.mxu0 0.0
        %371 = vmatprep.subr.mxu0 0.0
        %372 = vmatpush1.msra.mxu0 0.0
        %373 = vmatprep.subr.mxu0 0.0
        %374 = vmatpush1.msra.mxu0 0.0
        %375 = vmatprep.subr.mxu0 0.0
        %376 = vmatpush1.msra.mxu0 0.0
        %377 = vmatprep.subr.mxu0 0.0
        %378 = vmatpush1.msra.mxu0 0.0
        %379 = vmatprep.subr.mxu0 0.0
        %380 = vmatpush1.msra.mxu0 0.0
        %381 = vmatprep.subr.mxu0 0.0
        %382 = vmatpush1.msra.mxu0 0.0
        %383 = vmatprep.subr.mxu0 0.0
        %384 = vmatpush1.msra.mxu0 0.0
        %385 = vmatprep.subr.mxu0 0.0
        %386 = vmatpush1.msra.mxu0 0.0
        %387 = vmatprep.subr.mxu0 0.0
        %388 = vmatpush1.msra.mxu0 0.0
        %389 = vmatprep.subr.mxu0 0.0
        %390 = vmatpush1.msra.mxu0 0.0
        %391 = vmatprep.subr.mxu0 0.0
        %392 = vmatpush1.msra.mxu0 0.0
        %393 = vmatprep.subr.mxu0 0.0
        %394 = vmatpush1.msra.mxu0 0.0
        %395 = vmatprep.subr.mxu0 0.0
        %396 = vmatpush1.msra.mxu0 0.0
        %397 = vmatprep.subr.mxu0 0.0
        %398 = vmatpush1.msra.mxu0 0.0
        %399 = vmatprep.subr.mxu0 0.0
        %400 = vmatpush1.msra.mxu0 0.0
        %401 = vmatprep.subr.mxu0 0.0
        %402 = vmatpush1.msra.mxu0 0.0
        %403 = vmatprep.subr.mxu0 0.0
        %404 = vmatpush1.msra.mxu0 0.0
        %405 = vmatprep.subr.mxu0 0.0
        %406 = vmatpush1.msra.mxu0 0.0
        %407 = vmatprep.subr.mxu0 0.0
        %408 = vmatpush1.msra.mxu0 0.0
        %409 = vmatprep.subr.mxu0 0.0
        %410 = vmatpush1.msra.mxu0 0.0
        %411 = vmatprep.subr.mxu0 0.0
        %412 = vmatpush1.msra.mxu0 0.0
        %413 = vmatprep.mubr.f32.mxu0 0.0
        %414 = vmatmul.mubr.f32.gmra.mrb[0].mxu0 %v338
        %v415 = vpop.f32.mrb[0].mxu0
        %v416 = vadd.f32 0.0, %v415
        %v417 = vpop.f32.mrb[0].mxu0
        %418 = vmatprep.mubr.f32.mxu0 0.0
        %419 = vmatmul.mubr.f32.gmra.mrb[0].mxu0 %v341
        %v420 = vpop.f32.mrb[0].mxu0
        %v421 = vadd.f32 0.0, %v420
        %v422 = vpop.f32.mrb[0].mxu0
        %423 = vmatprep.mubr.f32.mxu0 0.0
        %424 = vmatmul.mubr.f32.gmra.mrb[0].mxu0 %v344
        %v425 = vpop.f32.mrb[0].mxu0
        %v426 = vadd.f32 0.0, %v425
        %v427 = vpop.f32.mrb[0].mxu0
        %428 = vmatprep.mubr.f32.mxu0 0.0
        %429 = vmatmul.mubr.f32.gmra.mrb[0].mxu0 %v347
        %v430 = vpop.f32.mrb[0].mxu0
        %v431 = vadd.f32 0.0, %v430
        %v432 = vpop.f32.mrb[0].mxu0
        %433 = vdwg.mxu0
        %v434 = vmul.f32 %v319, 0.25
        %v435 = vmul.f32 %v324, 0.25
        %v436 = vmul.f32 %v329, 0.25
        %v437 = vmul.f32 %v334, 0.25
        %vm438 = vcmask 64512
        %439 = vst.msk [vmem:[%s206] sm:$0xff] %vm438, %v434
        %440 = vst.msk [vmem:[%s206 + $0x8] sm:$0xff] %vm438, %v435
        %441 = vst.msk [vmem:[%s206 + $0x10] sm:$0xff] %vm438, %v436
        %442 = vst.msk [vmem:[%s206 + $0x18] sm:$0xff] %vm438, %v437
        %447 = vrot.lane.b32.xlu0 %v434, 120
        %v448 = vpop.permute.xlu0 %447
        %449 = vrot.lane.b32.xlu0 %v435, 120
        %v450 = vpop.permute.xlu0 %449
        %451 = vrot.lane.b32.xlu0 %v436, 120
        %v452 = vpop.permute.xlu0 %451
        %453 = vrot.lane.b32.xlu0 %v437, 120
        %v454 = vpop.permute.xlu0 %453
        %s459 = scalar_lea.vmem %s206, 32 [#allocation7]
        %460 = vst.msk [vmem:[%s459] sm:$0xff] %vm438, %v448
        %461 = vst.msk [vmem:[%s459 + $0x8] sm:$0xff] %vm438, %v450
        %462 = vst.msk [vmem:[%s459 + $0x10] sm:$0xff] %vm438, %v452
        %463 = vst.msk [vmem:[%s459 + $0x18] sm:$0xff] %vm438, %v454
        %v464 = vmul.f32 %v416, 0.25
        %v465 = vmul.f32 %v421, 0.25
        %v466 = vmul.f32 %v426, 0.25
        %v467 = vmul.f32 %v431, 0.25
        %s468 = scalar_lea.vmem %s206, 64 [#allocation7]
        %469 = vst.msk [vmem:[%s468] sm:$0xff] %vm438, %v464
        %470 = vst.msk [vmem:[%s468 + $0x8] sm:$0xff] %vm438, %v465
        %471 = vst.msk [vmem:[%s468 + $0x10] sm:$0xff] %vm438, %v466
        %472 = vst.msk [vmem:[%s468 + $0x18] sm:$0xff] %vm438, %v467
        %477 = vrot.lane.b32.xlu0 %v464, 120
        %v478 = vpop.permute.xlu0 %477
        %479 = vrot.lane.b32.xlu0 %v465, 120
        %v480 = vpop.permute.xlu0 %479
        %481 = vrot.lane.b32.xlu0 %v466, 120
        %v482 = vpop.permute.xlu0 %481
        %483 = vrot.lane.b32.xlu0 %v467, 120
        %v484 = vpop.permute.xlu0 %483
        %s489 = scalar_lea.vmem %s206, 96 [#allocation7]
        %490 = vst.msk [vmem:[%s489] sm:$0xff] %vm438, %v478
        %491 = vst.msk [vmem:[%s489 + $0x8] sm:$0xff] %vm438, %v480
        %492 = vst.msk [vmem:[%s489 + $0x10] sm:$0xff] %vm438, %v482
        %493 = vst.msk [vmem:[%s489 + $0x18] sm:$0xff] %vm438, %v484
        %s494 = sand.u32 %s102, 1
        %s495 = scalar_lea.sflag [#allocation4], %s494
        %s496 = sand.u32 %s102, 1
        %s497 = smul.addr %s496, 128
        %s498 = scalar_lea.vmem [#allocation7], %s497
        // Predicated region
        $region37: #{tpu_custom_call.1} parent=27 // pred_check
          %p499 = pneg %p112
        $region38: #{tpu_custom_call.1} parent=27 // pred_check_branch
          %501 = sbr.rel (%p499) target = $region40
        $region39: #{tpu_custom_call.1} parent=27 // pred_region
          %s502 = smul.u32 4, %s26
          %s504 = ssub.s32 2048, 2048
          %505 = vsyncadd %s495, %s504
          %s506 = sadd.s32 %s27, %s502
          %s507 = smul.addr %s25, 16
          %s508 = sadd.s32 %s506, %s507
          %s509 = smul.addr %s508, 128
          %s510 = scalar_lea.hbm %s2, %s509
          %s511 = sshll.u32 %s498, 4
          %s512 = int_to_ptr.vmem [resolvable:$true] %s511
          %517 = dma.vmem_to_hbm [thread:$0]  %s512, 2048, %s510, %s495, 128, 128, 8
        $region40: #{tpu_custom_call.1} parent=27 // pred_fallthru
          _
      $region28: #{tpu_custom_call.1} parent=5 // pred_fallthru
        _
      %p518 = scmp.le.s32.totalorder 2, %s15
      // Predicated region
      $region41: #{tpu_custom_call.1} parent=5 // pred_check
        %p519 = pneg %p518
      $region42: #{tpu_custom_call.1} parent=5 // pred_check_branch
        %521 = sbr.rel (%p519) target = $region44
      $region43: #{tpu_custom_call.1} parent=5 // pred_region
        %s522 = ssub.s32 %s15, 2
        // Predicated region
        $region45: #{tpu_custom_call.1} parent=43 // pred_check
          %p523 = pneg %p118
        $region46: #{tpu_custom_call.1} parent=43 // pred_check_branch
          %525 = sbr.rel (%p523) target = $region48
        $region47: #{tpu_custom_call.1} parent=43 // pred_region
          %s526 = sand.u32 %s103, 1
          %s527 = scalar_lea.sflag [#allocation4], %s526
          %s528 = sand.u32 %s103, 1
          %s529 = smul.addr %s528, 128
          %s530 = scalar_lea.vmem [#allocation7], %s529
          %531 = dma.done %s527, 2048
        $region48: #{tpu_custom_call.1} parent=43 // pred_fallthru
          _
      $region44: #{tpu_custom_call.1} parent=5 // pred_fallthru
        _
    $region6: #{tpu_custom_call.1} parent=1 // loop_footer
      %s19 = sadd.s32 1, %s15
    $region7: #{tpu_custom_call.1} parent=1 // loop_footer_branch
      %14 = sbr.rel target = $region3
    $region8: #{tpu_custom_call.1} parent=1 // loop_exit
      _
    %532 = vsyncpa [#allocation3], 1
    %s533 = scalar_lea.sflag [#allocation3], 1
    %534 = vsyncpa %s533, 1
    %535 = vsyncpa [#allocation6], 1
    %536 = vsyncpa [#allocation4], 1
    %s537 = scalar_lea.sflag [#allocation4], 1
    %538 = vsyncpa %s537, 1

</llo_original>
